<compile_context>
chip_gen: v7x
topology: tpu7x:2x2x1
jax: 0.10.0
libtpu: 0.0.40
codegen_flags: <defaults>
</compile_context>

<pallas_src>
import math

import jax
import jax.numpy as jnp
from jax.experimental import pallas as pl
from jax.experimental.pallas import tpu as pltpu


# ---------------------------------------------------------------------------
# Kernel: lane-major fused MLP.
#   x_ref   : (F, Bt)   bf16   activations, F = instr_dim + state_dim
#   w1t_ref : (h4, F)   bf16   folded (proj + fusion[0]) weight, transposed
#   b1_ref  : (h4, 1)   f32    folded bias
#   w2t_ref : (L, h4)   bf16   fusion[3] weight, transposed
#   b2_ref  : (L, 1)    f32
#   out_ref : (L, Bt)   f32
# ---------------------------------------------------------------------------
def fused_mlp_kernel(x_ref, w1t_ref, b1_ref, w2t_ref, b2_ref, out_ref):
    x = x_ref[...]
    w1t = w1t_ref[...]
    w2t = w2t_ref[...]

    # Folded layer: concat([instr_proj, state_proj]) @ W1 + b  ==  W1t' @ x + b'
    h = jnp.dot(w1t, x, preferred_element_type=jnp.float32) + b1_ref[...]
    h = jnp.maximum(h, 0.0)                      # ReLU (f32)
    # Dropout(0.1): identity in eval mode.
    # TODO(synk): train-mode dropout mask not implemented (inference semantics).
    h = h.astype(w2t.dtype)
    out_ref[...] = (
        jnp.dot(w2t, h, preferred_element_type=jnp.float32) + b2_ref[...]
    )


# ---------------------------------------------------------------------------
# Parameter handling
# ---------------------------------------------------------------------------
def init_params(key, instr_dim, state_dim, latent_dim, hidden_dim):
    """xavier_uniform weights stored transposed vs PyTorch (in, out), zero biases."""
    h4 = hidden_dim // 4
    h2 = hidden_dim // 2

    def xavier(k, fan_in, fan_out):
        bound = math.sqrt(6.0 / (fan_in + fan_out))
        return jax.random.uniform(k, (fan_in, fan_out), jnp.float32, -bound, bound)

    k1, k2, k3, k4 = jax.random.split(key, 4)
    wi = xavier(k1, instr_dim, h4)
    bi = jnp.zeros((1, h4), jnp.float32)
    ws = xavier(k2, state_dim, h4)
    bs = jnp.zeros((1, h4), jnp.float32)
    w1 = xavier(k3, h2, h4)
    b1 = jnp.zeros((1, h4), jnp.float32)
    w2 = xavier(k4, h4, latent_dim)
    b2 = jnp.zeros((1, latent_dim), jnp.float32)
    return (wi, bi, ws, bs, w1, b1, w2, b2)


def fold_params(params, dtype=jnp.bfloat16):
    """Fold instr_proj/state_proj into fusion[0] (all linear before the ReLU).

    concat([x_i @ wi + bi, x_s @ ws + bs]) @ w1 + b1
      == x_i @ (wi @ w1[:h4]) + x_s @ (ws @ w1[h4:])
         + (bi @ w1[:h4] + bs @ w1[h4:] + b1)

    Returns lane-major (transposed) kernel params:
      w1t (h4, F) dtype, b1c (h4, 1) f32, w2t (L, h4) dtype, b2c (L, 1) f32
    """
    wi, bi, ws, bs, w1, b1, w2, b2 = params
    h4 = wi.shape[1]
    w_fold = jnp.concatenate([wi @ w1[:h4], ws @ w1[h4:]], axis=0)   # (F, h4) f32
    b_fold = bi @ w1[:h4] + bs @ w1[h4:] + b1                        # (1, h4) f32

    w1t = w_fold.T.astype(dtype)                 # (h4, F)
    b1c = b_fold.reshape(h4, 1).astype(jnp.float32)
    w2t = w2.T.astype(dtype)                     # (L, h4)
    b2c = b2.reshape(-1, 1).astype(jnp.float32)
    return (w1t, b1c, w2t, b2c)


# ---------------------------------------------------------------------------
# Input fitting (matches the PyTorch flatten / truncate / zero-pad glue)
# ---------------------------------------------------------------------------
def _fit_vector(v, dim):
    v = jnp.asarray(v, jnp.float32).reshape(-1)
    n = v.shape[0]
    if n > dim:
        v = v[:dim]
    elif n < dim:
        v = jnp.concatenate([v, jnp.zeros((dim - n,), jnp.float32)])
    return v


def _fit_rows(v, dim):
    v = jnp.asarray(v, jnp.float32)
    v = v.reshape(v.shape[0], -1)
    n = v.shape[1]
    if n > dim:
        v = v[:, :dim]
    elif n < dim:
        v = jnp.pad(v, ((0, 0), (0, dim - n)))
    return v


# ---------------------------------------------------------------------------
# Wrappers
# ---------------------------------------------------------------------------
def memory_efficient_fusion_batched(instr_emb, state_obs, fused_params,
                                    instr_dim, state_dim, latent_dim,
                                    *, block_b=256):
    """Batched forward: B independent rows in one pallas_call.

    instr_emb: (B, ...) / state_obs: (B, ...) -> (B, latent_dim) f32.
    Batch lives on the lane axis inside the kernel; weights stay VMEM-resident.
    """
    w1t, b1c, w2t, b2c = fused_params
    h4, F = w1t.shape
    L = latent_dim

    instr = _fit_rows(instr_emb, instr_dim)      # (B, instr_dim)
    state = _fit_rows(state_obs, state_dim)      # (B, state_dim)
    assert instr.shape[0] == state.shape[0]
    B = instr.shape[0]
    assert F == instr_dim + state_dim

    # Lane-major activation slab (feature, batch), bf16 for the MXU.
    x = jnp.concatenate([instr, state], axis=1).T.astype(w1t.dtype)   # (F, B)

    # Pad batch to a lane-dense multiple of the tile size (>= 128).
    b_pad128 = max(128, ((B + 127) // 128) * 128)
    bt = max(128, (min(block_b, b_pad128) // 128) * 128)
    b_pad = ((b_pad128 + bt - 1) // bt) * bt
    if b_pad != B:
        x = jnp.pad(x, ((0, 0), (0, b_pad - B)))

    grid = (b_pad // bt,)
    flops = 2 * b_pad * (F * h4 + h4 * L)
    bytes_accessed = (F * b_pad * 2 + (w1t.size + w2t.size) * 2
                      + (b1c.size + b2c.size) * 4 + L * b_pad * 4)

    out = pl.pallas_call(
        fused_mlp_kernel,
        out_shape=jax.ShapeDtypeStruct((L, b_pad), jnp.float32),
        grid=grid,
        in_specs=[
            pl.BlockSpec((F, bt), lambda i: (0, i)),    # activations: tiled over batch
            pl.BlockSpec((h4, F), lambda i: (0, 0)),    # weights/biases: resident
            pl.BlockSpec((h4, 1), lambda i: (0, 0)),
            pl.BlockSpec((L, h4), lambda i: (0, 0)),
            pl.BlockSpec((L, 1), lambda i: (0, 0)),
        ],
        out_specs=pl.BlockSpec((L, bt), lambda i: (0, i)),
        compiler_params=pltpu.CompilerParams(
            dimension_semantics=("parallel",)),          # v7x: shard batch over 2 TCs
        cost_estimate=pl.CostEstimate(
            flops=int(flops), transcendentals=0, bytes_accessed=int(bytes_accessed)),
    )(x, w1t, b1c, w2t, b2c)

    return out[:, :B].T                                   # (B, L) f32


def memory_efficient_fusion(instr_emb, state_obs, fused_params,
                            instr_dim, state_dim, latent_dim):
    """Single-example forward matching MemoryEfficientFusion.forward.

    Returns a 1-D array of shape (latent_dim,).
    (At B=1 plain XLA fusion would have lower fixed cost than a pallas_call;
    the batched path above is the intended hot path.)
    """
    instr = _fit_vector(instr_emb, instr_dim).reshape(1, instr_dim)
    state = _fit_vector(state_obs, state_dim).reshape(1, state_dim)
    out = memory_efficient_fusion_batched(instr, state, fused_params,
                                          instr_dim, state_dim, latent_dim,
                                          block_b=128)
    return out[0]


# Reference that reproduces the kernel's bf16 quantization (for testing).
def _folded_reference_bf16(x_rows, fused_params):
    w1t, b1c, w2t, b2c = fused_params
    xb = x_rows.astype(jnp.bfloat16).astype(jnp.float32)
    h = jnp.maximum(xb @ w1t.astype(jnp.float32).T + b1c[:, 0], 0.0)
    hb = h.astype(jnp.bfloat16).astype(jnp.float32)
    return hb @ w2t.astype(jnp.float32).T + b2c[:, 0]


if __name__ == "__main__":
    instr_dim, state_dim, latent_dim, hidden_dim = 32, 16, 8, 32
    h4 = hidden_dim // 4

    key = jax.random.PRNGKey(0)
    kp, ki, ks, kb = jax.random.split(key, 4)

    params = init_params(kp, instr_dim, state_dim, latent_dim, hidden_dim)
    fused = fold_params(params, dtype=jnp.bfloat16)

    # ---- single-example path (module semantics) ----
    instr_emb = jax.random.normal(ki, (2, 16), jnp.float32)   # flattens to 32
    state_obs = jax.random.normal(ks, (state_dim,), jnp.float32)

    out1 = memory_efficient_fusion(instr_emb, state_obs, fused,
                                   instr_dim, state_dim, latent_dim)
    jax.block_until_ready(out1)
    assert out1.shape == (latent_dim,)

    # Check 1: folding algebra equals the original unfolded network (pure f32 JAX).
    wi, bi, ws, bs, w1, b1, w2, b2 = params
    iv = instr_emb.reshape(-1)[:instr_dim]
    sv = state_obs.reshape(-1)[:state_dim]
    comb = jnp.concatenate([iv @ wi + bi[0], sv @ ws + bs[0]])
    ref_unfused = jnp.maximum(comb @ w1 + b1[0], 0.0) @ w2 + b2[0]

    w_fold = jnp.concatenate([wi @ w1[:h4], ws @ w1[h4:]], axis=0)
    b_fold = (bi @ w1[:h4] + bs @ w1[h4:] + b1)[0]
    xcat = jnp.concatenate([iv, sv])
    ref_folded_f32 = jnp.maximum(xcat @ w_fold + b_fold, 0.0) @ w2 + b2[0]
    assert jnp.allclose(ref_folded_f32, ref_unfused, atol=1e-5), (ref_folded_f32, ref_unfused)

    # Check 2: kernel matches the folded reference with identical bf16 quantization.
    ref1 = _folded_reference_bf16(xcat.reshape(1, -1), fused)[0]
    assert jnp.allclose(out1, ref1, atol=2e-3, rtol=2e-3), (out1, ref1)

    # ---- batched path (amortizes launch + weight DMA across many rows) ----
    B = 512
    kb1, kb2 = jax.random.split(kb)
    instr_batch = jax.random.normal(kb1, (B, instr_dim), jnp.float32)
    state_batch = jax.random.normal(kb2, (B, state_dim), jnp.float32)

    out_b = memory_efficient_fusion_batched(instr_batch, state_batch, fused,
                                            instr_dim, state_dim, latent_dim,
                                            block_b=256)
    jax.block_until_ready(out_b)
    assert out_b.shape == (B, latent_dim)

    xb_rows = jnp.concatenate([instr_batch, state_batch], axis=1)
    ref_b = _folded_reference_bf16(xb_rows, fused)
    assert jnp.allclose(out_b, ref_b, atol=2e-3, rtol=2e-3)

    print("KERNEL_OK")
</pallas_src>

<mosaic_0001>
module attributes {stable_mosaic.version = 11 : i64} {
  func.func @fused_mlp_kernel(%arg0: i32, %arg1: memref<48x128xbf16, #tpu.memory_space<vmem>>, %arg2: memref<8x48xbf16, #tpu.memory_space<vmem>>, %arg3: memref<8x1xf32, #tpu.memory_space<vmem>>, %arg4: memref<8x8xbf16, #tpu.memory_space<vmem>>, %arg5: memref<8x1xf32, #tpu.memory_space<vmem>>, %arg6: memref<8x128xf32, #tpu.memory_space<vmem>>) attributes {dimension_semantics = [#tpu.dimension_semantics<parallel>], iteration_bounds = array<i64: 1>, scalar_prefetch = 0 : i64, scratch_operands = 0 : i64, tpu.core_type = #tpu.core_type<tc>, window_params = [{transform_indices = @transform_0, window_bounds = array<i64: 48, 128>}, {pipeline_mode = #tpu.pipeline_mode<synchronous>, transform_indices = @transform_1, window_bounds = array<i64: 8, 48>}, {pipeline_mode = #tpu.pipeline_mode<synchronous>, transform_indices = @transform_2, window_bounds = array<i64: 8, 1>}, {pipeline_mode = #tpu.pipeline_mode<synchronous>, transform_indices = @transform_3, window_bounds = array<i64: 8, 8>}, {pipeline_mode = #tpu.pipeline_mode<synchronous>, transform_indices = @transform_4, window_bounds = array<i64: 8, 1>}, {transform_indices = @transform_5, window_bounds = array<i64: 8, 128>}]} {
    %c0 = arith.constant 0 : index
    %c0_0 = arith.constant 0 : index
    %0 = vector.load %arg1[%c0, %c0_0] : memref<48x128xbf16, #tpu.memory_space<vmem>>, vector<48x128xbf16>
    %c0_1 = arith.constant 0 : index
    %c0_2 = arith.constant 0 : index
    %1 = vector.load %arg2[%c0_1, %c0_2] : memref<8x48xbf16, #tpu.memory_space<vmem>>, vector<8x48xbf16>
    %c0_3 = arith.constant 0 : index
    %c0_4 = arith.constant 0 : index
    %2 = vector.load %arg4[%c0_3, %c0_4] : memref<8x8xbf16, #tpu.memory_space<vmem>>, vector<8x8xbf16>
    %cst = arith.constant dense<0.000000e+00> : vector<8x128xf32>
    %3 = tpu.matmul %1, %0, %cst {dimension_numbers = #tpu.dot_dimension_numbers<[1], [0], [0], [1], [0, 0, 1, 1], [], []>} : vector<8x48xbf16>, vector<48x128xbf16>, vector<8x128xf32> -> vector<8x128xf32>
    %c0_5 = arith.constant 0 : index
    %c0_6 = arith.constant 0 : index
    %4 = vector.load %arg3[%c0_5, %c0_6] : memref<8x1xf32, #tpu.memory_space<vmem>>, vector<8x1xf32>
    %5 = vector.broadcast %4 : vector<8x1xf32> to vector<8x128xf32>
    %6 = arith.addf %3, %5 : vector<8x128xf32>
    %cst_7 = arith.constant 0.000000e+00 : f32
    %7 = vector.broadcast %cst_7 : f32 to vector<8x128xf32>
    %8 = arith.maximumf %6, %7 : vector<8x128xf32>
    %9 = arith.truncf %8 : vector<8x128xf32> to vector<8x128xbf16>
    %cst_8 = arith.constant dense<0.000000e+00> : vector<8x128xf32>
    %10 = tpu.matmul %2, %9, %cst_8 {dimension_numbers = #tpu.dot_dimension_numbers<[1], [0], [0], [1], [0, 0, 1, 1], [], []>} : vector<8x8xbf16>, vector<8x128xbf16>, vector<8x128xf32> -> vector<8x128xf32>
    %c0_9 = arith.constant 0 : index
    %c0_10 = arith.constant 0 : index
    %11 = vector.load %arg5[%c0_9, %c0_10] : memref<8x1xf32, #tpu.memory_space<vmem>>, vector<8x1xf32>
    %12 = vector.broadcast %11 : vector<8x1xf32> to vector<8x128xf32>
    %13 = arith.addf %10, %12 : vector<8x128xf32>
    %c0_11 = arith.constant 0 : index
    %c0_12 = arith.constant 0 : index
    %14 = vector.load %arg6[%c0_11, %c0_12] : memref<8x128xf32, #tpu.memory_space<vmem>>, vector<8x128xf32>
    tpu.vector_store %arg6[%c0_11, %c0_12], %13 {strides = array<i32>} : memref<8x128xf32, #tpu.memory_space<vmem>>, vector<8x128xf32>,
    return
  }
  func.func @transform_0(%arg0: i32) -> (i32, i32) {
    %c0_i32 = arith.constant 0 : i32
    %c0_i32_0 = arith.constant 0 : i32
    return %c0_i32, %arg0 : i32, i32
  }
  func.func @transform_1(%arg0: i32) -> (i32, i32) {
    %c0_i32 = arith.constant 0 : i32
    %c0_i32_0 = arith.constant 0 : i32
    %c0_i32_1 = arith.constant 0 : i32
    return %c0_i32, %c0_i32_0 : i32, i32
  }
  func.func @transform_2(%arg0: i32) -> (i32, i32) {
    %c0_i32 = arith.constant 0 : i32
    %c0_i32_0 = arith.constant 0 : i32
    %c0_i32_1 = arith.constant 0 : i32
    return %c0_i32, %c0_i32_0 : i32, i32
  }
  func.func @transform_3(%arg0: i32) -> (i32, i32) {
    %c0_i32 = arith.constant 0 : i32
    %c0_i32_0 = arith.constant 0 : i32
    %c0_i32_1 = arith.constant 0 : i32
    return %c0_i32, %c0_i32_0 : i32, i32
  }
  func.func @transform_4(%arg0: i32) -> (i32, i32) {
    %c0_i32 = arith.constant 0 : i32
    %c0_i32_0 = arith.constant 0 : i32
    %c0_i32_1 = arith.constant 0 : i32
    return %c0_i32, %c0_i32_0 : i32, i32
  }
  func.func @transform_5(%arg0: i32) -> (i32, i32) {
    %c0_i32 = arith.constant 0 : i32
    %c0_i32_0 = arith.constant 0 : i32
    return %c0_i32, %arg0 : i32, i32
  }
}

</mosaic_0001>

<llo_original>
// kernel: tpu_custom_call.1
$region0: #{tpu_custom_call.1}
  #allocation0 [shape = 'u32[]', space=smem, size = 0x4, offset = 0x4, fixed_abs, tag = 'smem constant byte address 0x4 - core index']
  #allocation1 [shape = 'u32[144,128]{1,0:T(1,128)}', space=vmem, size = 0x12000, scoped, tag = 'internal scratch']
  %s0 = inlined_call_operand.hbm [shape: bf16[48,128], index: 0, kind: input, shape index: {}]
  %s1 = inlined_call_operand.vmem [shape: bf16[8,48], index: 1, kind: input, shape index: {}]
  %s2 = inlined_call_operand.vmem [shape: f32[8,1], index: 2, kind: input, shape index: {}]
  %s3 = inlined_call_operand.vmem [shape: bf16[8,8], index: 3, kind: input, shape index: {}]
  %s4 = inlined_call_operand.vmem [shape: f32[8,1], index: 4, kind: input, shape index: {}]
  %s5 = inlined_call_operand.hbm [shape: f32[8,128], index: 5, kind: output, shape index: {}]
  %s6 = sld [smem:[#allocation0]]
  $region34: #{tpu_custom_call.1} parent=0
    _
  %s8 = ssub.s32 1, %s6
  %s9 = scalar_select 0, %s8, %s6
  $region1: #{tpu_custom_call.1} parent=0
    #allocation2 [shape = 'u8[12288]{0}', space=vmem, size = 0x3000, scoped, tag = 'input window, operand 0, single buffered']
    #allocation3 [shape = 's32[1]{0}', space=sflag, size = 0x4, scoped, tag = 'scoped memory for tpu_custom_call.1']
    #allocation4 [shape = 's32[1]{0}', space=sflag, size = 0x4, scoped, tag = 'scoped memory for tpu_custom_call.1']
    #allocation5 [shape = 'u8[4096]{0}', space=vmem, size = 0x1000, scoped, tag = 'output window, operand 0, single buffered']
    %10 = vsyncpa [#allocation3], 0
    %11 = vsyncpa [#allocation4], 0
    // Predicated region
    $region2: #{tpu_custom_call.1} parent=1 // pred_check
      _
    $region3: #{tpu_custom_call.1} parent=1 // pred_check_branch
      %13 = sbr.rel (0) target = $region5
    $region4: #{tpu_custom_call.1} parent=1 // pred_region
      %s15 = ssub.s32 384, 384
      %16 = vsyncadd [#allocation3], %s15
      %s17 = sshll.u32 [#allocation2], 4
      %s18 = int_to_ptr.vmem [resolvable:$true] %s17
      %23 = dma.hbm_to_vmem [thread:$0]  %s0, 384, %s18, [#allocation3], 64, 64, 4
    $region5: #{tpu_custom_call.1} parent=1 // pred_fallthru
      _
    // Predicated region
    $region6: #{tpu_custom_call.1} parent=1 // pred_check
      _
    $region7: #{tpu_custom_call.1} parent=1 // pred_check_branch
      %25 = sbr.rel (0) target = $region9
    $region8: #{tpu_custom_call.1} parent=1 // pred_region
      _
    $region9: #{tpu_custom_call.1} parent=1 // pred_fallthru
      _
    // Predicated region
    $region10: #{tpu_custom_call.1} parent=1 // pred_check
      _
    $region11: #{tpu_custom_call.1} parent=1 // pred_check_branch
      %27 = sbr.rel (0) target = $region13
    $region12: #{tpu_custom_call.1} parent=1 // pred_region
      _
    $region13: #{tpu_custom_call.1} parent=1 // pred_fallthru
      _
    // Predicated region
    $region14: #{tpu_custom_call.1} parent=1 // pred_check
      _
    $region15: #{tpu_custom_call.1} parent=1 // pred_check_branch
      %29 = sbr.rel (0) target = $region17
    $region16: #{tpu_custom_call.1} parent=1 // pred_region
      _
    $region17: #{tpu_custom_call.1} parent=1 // pred_fallthru
      _
    // Predicated region
    $region18: #{tpu_custom_call.1} parent=1 // pred_check
      _
    $region19: #{tpu_custom_call.1} parent=1 // pred_check_branch
      %31 = sbr.rel (0) target = $region21
    $region20: #{tpu_custom_call.1} parent=1 // pred_region
      _
    $region21: #{tpu_custom_call.1} parent=1 // pred_fallthru
      _
    // Predicated region
    $region22: #{tpu_custom_call.1} parent=1 // pred_check
      _
    $region23: #{tpu_custom_call.1} parent=1 // pred_check_branch
      %33 = sbr.rel (0) target = $region25
    $region24: #{tpu_custom_call.1} parent=1 // pred_region
      %34 = dma.done [#allocation3], 384
    $region25: #{tpu_custom_call.1} parent=1 // pred_fallthru
      _
    %v36 = vld [vmem:[#allocation2] sm:$0xf]
    %v37 = vld [vmem:[#allocation2 + $0x4] sm:$0xf]
    %v38 = vld [vmem:[#allocation2 + $0x8] sm:$0xf]
    %v39 = vld [vmem:[#allocation2 + $0xc] sm:$0xf]
    %v40 = vld [vmem:[#allocation2 + $0x10] sm:$0xf]
    %v41 = vld [vmem:[#allocation2 + $0x14] sm:$0xf]
    %v42 = vld [vmem:[%s1] sm:$0xf]
    %v43 = vld [vmem:[%s3] sm:$0xf]
    %v44 = vld [vmem:[%s2] sm:$0xff]
    %46 = vset.pattern.permute.xlu0 0
    %47 = vperm.xlu0 %46, %v44
    %v48 = vpop.permute.xlu0 %47
    %v56 = vunpack.c.l.b16 %v36
    %v57 = vunpack.c.l.b16 %v37
    %v58 = vunpack.c.l.b16 %v38
    %v59 = vunpack.c.l.b16 %v39
    %v60 = vunpack.c.l.b16 %v40
    %v61 = vunpack.c.l.b16 %v41
    %v62 = vpack.c.b16 %v57, %v56
    %v63 = vpack.c.b16 %v59, %v58
    %v64 = vpack.c.b16 %v61, %v60
    %vm68 = vcmask 392192
    %v70 = vsel %vm68, %v42, 0
    %72 = vmatprep.subr.bf16.mxu0 0
    %73 = vmatpush1.bf16.msra.mxu0 %v62
    %74 = vmatprep.subr.bf16.mxu0 0
    %75 = vmatpush1.bf16.msra.mxu0 %v63
    %76 = vmatprep.subr.bf16.mxu0 0
    %77 = vmatpush1.bf16.msra.mxu0 %v64
    %78 = vmatprep.subr.bf16.mxu0 0
    %79 = vmatpush1.bf16.msra.mxu0 0
    %80 = vmatprep.subr.bf16.mxu0 0
    %81 = vmatpush1.bf16.msra.mxu0 0
    %82 = vmatprep.subr.bf16.mxu0 0
    %83 = vmatpush1.bf16.msra.mxu0 0
    %84 = vmatprep.subr.bf16.mxu0 0
    %85 = vmatpush1.bf16.msra.mxu0 0
    %86 = vmatprep.subr.bf16.mxu0 0
    %87 = vmatpush1.bf16.msra.mxu0 0
    %88 = vmatprep.subr.bf16.mxu0 0
    %89 = vmatpush1.bf16.msra.mxu0 0
    %90 = vmatprep.subr.bf16.mxu0 0
    %91 = vmatpush1.bf16.msra.mxu0 0
    %92 = vmatprep.subr.bf16.mxu0 0
    %93 = vmatpush1.bf16.msra.mxu0 0
    %94 = vmatprep.subr.bf16.mxu0 0
    %95 = vmatpush1.bf16.msra.mxu0 0
    %96 = vmatprep.subr.bf16.mxu0 0
    %97 = vmatpush1.bf16.msra.mxu0 0
    %98 = vmatprep.subr.bf16.mxu0 0
    %99 = vmatpush1.bf16.msra.mxu0 0
    %100 = vmatprep.subr.bf16.mxu0 0
    %101 = vmatpush1.bf16.msra.mxu0 0
    %102 = vmatprep.subr.bf16.mxu0 0
    %103 = vmatpush1.bf16.msra.mxu0 0
    %104 = vmatprep.mubr.bf16.mxu0 0
    %105 = vmatmul.mubr.bf16.gmra.mrb[0].mxu0 %v70
    %v106 = vpop.f32.mrb[0].mxu0
    %v107 = vadd.f32 %v48, %v106
    %v108 = vpop.f32.mrb[0].mxu0
    %v109 = vpop.f32.mrb[0].mxu0
    %v110 = vpop.f32.mrb[0].mxu0
    %111 = vdwg.mxu0
    %v112 = vmax.f32 %v107, 0.0
    %v113 = vpack.c.bf16 %v112, %v112
    %v114 = vld [vmem:[%s4] sm:$0xff]
    %116 = vset.pattern.permute.xlu0 0
    %117 = vperm.xlu0 %116, %v114
    %v118 = vpop.permute.xlu0 %117
    %vm120 = vcmask 64512
    %v122 = vsel %vm120, %v43, 0
    %vm124 = vcmask 1043456
    %v126 = vsel %vm124, %v113, 0
    %128 = vmatprep.subr.bf16.mxu0 0
    %129 = vmatpush1.bf16.msra.mxu0 %v126
    %130 = vmatprep.subr.bf16.mxu0 0
    %131 = vmatpush1.bf16.msra.mxu0 0
    %132 = vmatprep.subr.bf16.mxu0 0
    %133 = vmatpush1.bf16.msra.mxu0 0
    %134 = vmatprep.subr.bf16.mxu0 0
    %135 = vmatpush1.bf16.msra.mxu0 0
    %136 = vmatprep.subr.bf16.mxu0 0
    %137 = vmatpush1.bf16.msra.mxu0 0
    %138 = vmatprep.subr.bf16.mxu0 0
    %139 = vmatpush1.bf16.msra.mxu0 0
    %140 = vmatprep.subr.bf16.mxu0 0
    %141 = vmatpush1.bf16.msra.mxu0 0
    %142 = vmatprep.subr.bf16.mxu0 0
    %143 = vmatpush1.bf16.msra.mxu0 0
    %144 = vmatprep.subr.bf16.mxu0 0
    %145 = vmatpush1.bf16.msra.mxu0 0
    %146 = vmatprep.subr.bf16.mxu0 0
    %147 = vmatpush1.bf16.msra.mxu0 0
    %148 = vmatprep.subr.bf16.mxu0 0
    %149 = vmatpush1.bf16.msra.mxu0 0
    %150 = vmatprep.subr.bf16.mxu0 0
    %151 = vmatpush1.bf16.msra.mxu0 0
    %152 = vmatprep.subr.bf16.mxu0 0
    %153 = vmatpush1.bf16.msra.mxu0 0
    %154 = vmatprep.subr.bf16.mxu0 0
    %155 = vmatpush1.bf16.msra.mxu0 0
    %156 = vmatprep.subr.bf16.mxu0 0
    %157 = vmatpush1.bf16.msra.mxu0 0
    %158 = vmatprep.subr.bf16.mxu0 0
    %159 = vmatpush1.bf16.msra.mxu0 0
    %160 = vmatprep.mubr.bf16.mxu0 0
    %161 = vmatmul.mubr.bf16.gmra.mrb[0].mxu0 %v122
    %v162 = vpop.f32.mrb[0].mxu0
    %v163 = vadd.f32 %v118, %v162
    %v164 = vpop.f32.mrb[0].mxu0
    %v165 = vpop.f32.mrb[0].mxu0
    %v166 = vpop.f32.mrb[0].mxu0
    %167 = vdwg.mxu0
    %168 = vst [vmem:[#allocation5] sm:$0xff] %v163
    // Predicated region
    $region26: #{tpu_custom_call.1} parent=1 // pred_check
      _
    $region27: #{tpu_custom_call.1} parent=1 // pred_check_branch
      %170 = sbr.rel (0) target = $region29
    $region28: #{tpu_custom_call.1} parent=1 // pred_region
      %s172 = ssub.s32 128, 128
      %173 = vsyncadd [#allocation4], %s172
      %s175 = sshll.u32 [#allocation5], 4
      %s176 = int_to_ptr.vmem [resolvable:$true] %s175
      %178 = dma.vmem_to_hbm [thread:$0]  %s176, 128, %s5, [#allocation4]
    $region29: #{tpu_custom_call.1} parent=1 // pred_fallthru
      _
    // Predicated region
    $region30: #{tpu_custom_call.1} parent=1 // pred_check
      _
    $region31: #{tpu_custom_call.1} parent=1 // pred_check_branch
      %180 = sbr.rel (0) target = $region33
    $region32: #{tpu_custom_call.1} parent=1 // pred_region
      %181 = dma.done [#allocation4], 128
    $region33: #{tpu_custom_call.1} parent=1 // pred_fallthru
      _
    %182 = vsyncpa [#allocation3], 1
    %183 = vsyncpa [#allocation4], 1

</llo_original>
